<compile_context>
chip_gen: v7x
topology: tpu7x:2x2x1
jax: 0.10.0
libtpu: 0.0.40
codegen_flags: <defaults>
</compile_context>

<pallas_src>
import functools

import jax
import jax.numpy as jnp
from jax.experimental import pallas as pl
from jax.experimental.pallas import tpu as pltpu

EMBED = 64      # args.embed_size
NH = 4          # transformer heads
ATT = 16        # per-head attention dim (NH * ATT == EMBED)

_COMPILER_PARAMS = pltpu.CompilerParams(
    dimension_semantics=("parallel",),
    # Sized for v7x's 64 MiB/TC (review): at block_rows=512 the live attention
    # temporaries are ~8-10 MiB, weights + double-buffered row blocks < 2 MiB.
    vmem_limit_bytes=32 * 1024 * 1024,
)


# ----------------------------- helpers --------------------------------------

def _round_up(n, m):
    return ((n + m - 1) // m) * m


def _pad_rows(a, n_pad):
    n = a.shape[0]
    if n == n_pad:
        return a
    return jnp.pad(a, [(0, n_pad - n)] + [(0, 0)] * (a.ndim - 1))


def _choose_tiling(n, max_rows):
    # Never emit a 1-step grid (review: v7x has 2 TensorCores); split small
    # batches into two row blocks.  Rows are rounded to a multiple of 8 so the
    # sublane dim of every block satisfies the (8, 128) divisibility rule.
    if n <= 8:
        return 8, 8
    if n <= max_rows:
        half = _round_up((n + 1) // 2, 8)
        return 2 * half, half
    n_pad = _round_up(n, max_rows)
    return n_pad, max_rows


@functools.lru_cache(maxsize=1)
def _seg_mask_scaled():
    # seg[a, b] = 0.125 iff a//ATT == b//ATT.  One MXU matmul against this
    # mask performs the per-head segmented reduce, applies the 1/8 attention
    # scale AND broadcasts every head's score over its 16 lanes.
    h = jnp.arange(EMBED) // ATT
    return jnp.where(h[:, None] == h[None, :], jnp.float32(0.125),
                     jnp.float32(0.0))


# ----------------------------- Pallas kernels ------------------------------

def _item_fused_kernel(hop_ref,                       # scalar-prefetch (SMEM)
                       x_ref, pemb_ref, user_hbm, img_ref, txt_ref,
                       qw_ref, kvw_ref, seg_ref,
                       wm1i_ref, wm1t_ref, wm2_ref, woh_ref,
                       w1_ref, b1_ref, w2_ref, b2_ref,
                       o_ref,
                       oh_buf, sem):
    # Fused: one-hop gather + multi-head transformer + linear_mul1/2 +
    # linear_onehop + mlp_item, all in one pallas_call over item-row blocks.
    x = x_ref[0]                                      # scalar from SMEM
    pemb = pemb_ref[...]                              # (bi, 64)
    bi = pemb_ref.shape[0]
    n_rows = oh_buf.shape[0]                          # bi * L
    L = n_rows // bi
    d = EMBED
    base = pl.program_id(0) * n_rows

    # -- 1) issue the one-hop gather: user_emb rows -> VMEM scratch -----------
    @pl.loop(0, n_rows)
    def _(j):
        pltpu.make_async_copy(
            user_hbm.at[pl.ds(hop_ref[base + j], 1)],
            oh_buf.at[pl.ds(j, 1)],
            sem).start()

    # -- 2) work that does not need the gathered rows (hides DMA latency) -----
    qe = jnp.dot(pemb, qw_ref[...], preferred_element_type=jnp.float32)  # (bi,64)
    # cat(img, txt) @ linear_mul1 done as a split-matmul sum (no HBM concat).
    fh = (jnp.dot(img_ref[...], wm1i_ref[...], preferred_element_type=jnp.float32)
          + jnp.dot(txt_ref[...], wm1t_ref[...], preferred_element_type=jnp.float32))
    fea_emb = jnp.dot(fh, wm2_ref[...], preferred_element_type=jnp.float32)

    # -- 3) wait for the gathered rows (same descriptors as the starts) -------
    @pl.loop(0, n_rows)
    def _(j):
        pltpu.make_async_copy(
            user_hbm.at[pl.ds(hop_ref[base + j], 1)],
            oh_buf.at[pl.ds(j, 1)],
            sem).wait()

    # -- 4) multi-head attention, all NH heads at once (query length is 1) ----
    oh2 = oh_buf[...]                                                   # (bi*L, 64)
    # Packed [K|V] projection: one full-128-lane MXU matmul instead of two
    # half-width ones; the halves are static lane slices (XLU relayout).
    kve = jnp.dot(oh2, kvw_ref[...], preferred_element_type=jnp.float32)  # (bi*L,128)
    ke = kve[:, :d]
    ve = kve[:, d:]
    prod = qe[:, None, :] * ke.reshape(bi, L, d)                        # (bi, L, 64)
    s = jnp.dot(prod.reshape(n_rows, d), seg_ref[...],
                preferred_element_type=jnp.float32).reshape(bi, L, d)   # scaled scores
    m = jnp.max(s, axis=1)                                              # (bi, 64)
    e = jnp.exp(s - m[:, None, :])
    denom = jnp.sum(e, axis=1)                                          # (bi, 64)
    p = e / denom[:, None, :]          # exact divide: denom is tiny (review fix)
    onehop_out = jnp.sum(p * ve.reshape(bi, L, d), axis=1)              # (bi, 64)

    # -- 5) combine + mlp_item (every layer, incl. ReLU, is followed by * x) ---
    item_oh = jnp.dot(onehop_out, woh_ref[...], preferred_element_type=jnp.float32)
    top = pemb * fea_emb + item_oh
    h = (jnp.dot(top, w1_ref[...], preferred_element_type=jnp.float32)
         + b1_ref[...]) * x
    h = jnp.maximum(h, 0.0) * x
    # NOTE: output keeps its natural (N, 64) layout; the final store is the
    # only 64-lane access and the kernel is gather/MXU dominated, so we skip a
    # cross-lane relayout just to make it 128-lane dense (measure-first item).
    o_ref[...] = (jnp.dot(h, w2_ref[...], preferred_element_type=jnp.float32)
                  + b2_ref[...]) * x


def _user_mlp_kernel(x_ref, u_ref, w1_ref, b1_ref, w2_ref, b2_ref, o_ref):
    x = x_ref[0]
    u = u_ref[...]
    h = (jnp.dot(u, w1_ref[...], preferred_element_type=jnp.float32)
         + b1_ref[...]) * x
    h = jnp.maximum(h, 0.0) * x
    o_ref[...] = (jnp.dot(h, w2_ref[...], preferred_element_type=jnp.float32)
                  + b2_ref[...]) * x


# ----------------------------- wrappers -------------------------------------

def user_mlp_pallas(x1, u, w1, b1, w2, b2, block_rows=512):
    # Kept as a separate (tiny) pallas_call: merging it into the item kernel
    # would need a program_id-gated branch with both weight sets resident for
    # little gain; accepted per review when both batches are non-trivial.
    nu, d = u.shape
    hid = w1.shape[1]
    n_pad, bu = _choose_tiling(nu, block_rows)
    u_p = _pad_rows(u, n_pad)
    full = lambda i: (0, 0)
    out = pl.pallas_call(
        _user_mlp_kernel,
        out_shape=jax.ShapeDtypeStruct((n_pad, d), jnp.float32),
        grid=(n_pad // bu,),
        in_specs=[
            pl.BlockSpec(memory_space=pltpu.MemorySpace.SMEM),   # x scalar
            pl.BlockSpec((bu, d), lambda i: (i, 0)),
            pl.BlockSpec((d, hid), full),
            pl.BlockSpec((1, hid), full),
            pl.BlockSpec((hid, d), full),
            pl.BlockSpec((1, d), full),
        ],
        out_specs=pl.BlockSpec((bu, d), lambda i: (i, 0)),
        compiler_params=_COMPILER_PARAMS,
    )(x1, u_p, w1, b1, w2, b2)
    return out[:nu]


def item_fused_pallas(x1, photo_one_hop, user_emb, pemb, img, txt,
                      qw, kvw, seg, wm1_img, wm1_txt, wm2, woh,
                      w1, b1, w2, b2, block_rows=512):
    ni, d = pemb.shape
    L = photo_one_hop.shape[1]
    fi = img.shape[1]
    ft = txt.shape[1]
    hid4 = wm2.shape[0]
    hid = w1.shape[1]
    n_pad, bi = _choose_tiling(ni, block_rows)
    pemb_p = _pad_rows(pemb, n_pad)
    img_p = _pad_rows(img, n_pad)
    txt_p = _pad_rows(txt, n_pad)
    # Padded tail rows gather user row 0 (valid index); their outputs are
    # sliced off below, so they only cost a little wasted compute.
    hop_flat = _pad_rows(photo_one_hop, n_pad).reshape(-1).astype(jnp.int32)

    full = lambda i, hop: (0, 0)
    row = lambda i, hop: (i, 0)
    out = pl.pallas_call(
        _item_fused_kernel,
        out_shape=jax.ShapeDtypeStruct((n_pad, d), jnp.float32),
        grid_spec=pltpu.PrefetchScalarGridSpec(
            num_scalar_prefetch=1,                      # photo_one_hop -> SMEM
            grid=(n_pad // bi,),
            in_specs=[
                pl.BlockSpec(memory_space=pltpu.MemorySpace.SMEM),  # x scalar
                pl.BlockSpec((bi, d), row),                         # photo_id emb
                pl.BlockSpec(memory_space=pl.ANY),                  # user table (HBM)
                pl.BlockSpec((bi, fi), row),                        # image feats
                pl.BlockSpec((bi, ft), row),                        # text feats
                pl.BlockSpec((d, NH * ATT), full),                  # Q
                pl.BlockSpec((d, 2 * NH * ATT), full),              # packed [K|V]
                pl.BlockSpec((NH * ATT, NH * ATT), full),           # scaled head mask
                pl.BlockSpec((fi, hid4), full),                     # linear_mul1 (img rows)
                pl.BlockSpec((ft, hid4), full),                     # linear_mul1 (txt rows)
                pl.BlockSpec((hid4, d), full),                      # linear_mul2
                pl.BlockSpec((d, d), full),                         # linear_onehop
                pl.BlockSpec((d, hid), full),                       # mlp_item W1
                pl.BlockSpec((1, hid), full),                       # mlp_item b1
                pl.BlockSpec((hid, d), full),                       # mlp_item W2
                pl.BlockSpec((1, d), full),                         # mlp_item b2
            ],
            out_specs=pl.BlockSpec((bi, d), row),
            scratch_shapes=[
                pltpu.VMEM((bi * L, d), jnp.float32),   # gathered one-hop rows
                pltpu.SemaphoreType.DMA(()),            # gather completion sem
            ],
        ),
        compiler_params=_COMPILER_PARAMS,
    )(hop_flat, x1, pemb_p, user_emb, img_p, txt_p, qw, kvw, seg,
      wm1_img, wm1_txt, wm2, woh, w1, b1, w2, b2)
    return out[:ni]


def neumf_forward(params, x, photo_one_hop):
    user_emb = params["user_emb"]       # user_id_embedding.weight  (n_users, 64)
    photo_emb = params["photo_emb"]     # photo_id_embedding.weight (n_items, 64)

    img_dim = params["image_feats"].shape[1]
    wm1_img = params["wm1"][:img_dim]       # split once so the kernel never
    wm1_txt = params["wm1"][img_dim:]       # needs cat(image, text) in HBM
    kvw = jnp.concatenate([params["Kw"], params["Vw"]], axis=1)  # (64, 128)
    seg = _seg_mask_scaled()                # cached, already * 0.125
    x1 = jnp.asarray(x, jnp.float32).reshape(1)

    user_top = user_mlp_pallas(x1, user_emb,
                               params["u_w1"], params["u_b1"],
                               params["u_w2"], params["u_b2"])
    item_top = item_fused_pallas(x1, photo_one_hop, user_emb, photo_emb,
                                 params["image_feats"], params["text_feats"],
                                 params["Qw"], kvw, seg,
                                 wm1_img, wm1_txt, params["wm2"], params["woh"],
                                 params["i_w1"], params["i_b1"],
                                 params["i_w2"], params["i_b2"])
    return user_top, item_top


# ----------------------------- reference (pure JAX) --------------------------

def neumf_reference(params, x, photo_one_hop):
    user_emb = params["user_emb"]
    photo_emb = params["photo_emb"]
    ni = photo_emb.shape[0]
    L = photo_one_hop.shape[1]
    onehop_emb = user_emb[photo_one_hop]
    qe = photo_emb @ params["Qw"]
    ke = onehop_emb @ params["Kw"]
    ve = onehop_emb @ params["Vw"]
    qh = qe.reshape(ni, NH, ATT)
    kh = ke.reshape(ni, L, NH, ATT)
    vh = ve.reshape(ni, L, NH, ATT)
    s = jnp.einsum("bhd,blhd->bhl", qh, kh) / 8.0
    p = jax.nn.softmax(s, axis=-1)
    onehop_out = jnp.einsum("bhl,blhd->bhd", p, vh).reshape(ni, NH * ATT)
    item_feats = jnp.concatenate([params["image_feats"], params["text_feats"]],
                                 axis=-1)
    fea_emb = (item_feats @ params["wm1"]) @ params["wm2"]
    item_oh = onehop_out @ params["woh"]
    user_top = user_emb
    item_top = photo_emb * fea_emb + item_oh
    user_top = (user_top @ params["u_w1"] + params["u_b1"]) * x
    user_top = jnp.maximum(user_top, 0.0) * x
    user_top = (user_top @ params["u_w2"] + params["u_b2"]) * x
    item_top = (item_top @ params["i_w1"] + params["i_b1"]) * x
    item_top = jnp.maximum(item_top, 0.0) * x
    item_top = (item_top @ params["i_w2"] + params["i_b2"]) * x
    return user_top, item_top


# ----------------------------- main ------------------------------------------

def _xavier(key, shape):
    fan_in, fan_out = shape
    bound = (6.0 / (fan_in + fan_out)) ** 0.5
    return jax.random.uniform(key, shape, jnp.float32, -bound, bound)


if __name__ == "__main__":
    key = jax.random.PRNGKey(0)
    n_users, n_items, L = 32, 16, 8
    img_dim, txt_dim = 32, 16
    keys = jax.random.split(key, 20)

    params = {
        "user_emb": _xavier(keys[0], (n_users, EMBED)),
        "photo_emb": _xavier(keys[1], (n_items, EMBED)),
        "image_feats": jax.random.normal(keys[2], (n_items, img_dim), jnp.float32),
        "text_feats": jax.random.normal(keys[3], (n_items, txt_dim), jnp.float32),
        # Transformer(col=64, nh=4, action_item_size=64, att_emb_size=16)
        "Qw": _xavier(keys[4], (EMBED, NH * ATT)),
        "Kw": _xavier(keys[5], (EMBED, NH * ATT)),
        "Vw": _xavier(keys[6], (EMBED, NH * ATT)),
        # linear_mul1 / linear_mul2 / linear_onehop (bias=False), stored (in,out)
        "wm1": _xavier(keys[7], (img_dim + txt_dim, EMBED * 4)),
        "wm2": _xavier(keys[8], (EMBED * 4, EMBED)),
        "woh": _xavier(keys[9], (EMBED, EMBED)),
        # mlp_user: Linear(64,128), ReLU, Linear(128,64)
        "u_w1": _xavier(keys[10], (EMBED, EMBED * 2)),
        "u_b1": jax.random.uniform(keys[11], (1, EMBED * 2), jnp.float32, -0.1, 0.1),
        "u_w2": _xavier(keys[12], (EMBED * 2, EMBED)),
        "u_b2": jax.random.uniform(keys[13], (1, EMBED), jnp.float32, -0.1, 0.1),
        # mlp_item: Linear(64,128), ReLU, Linear(128,64)
        "i_w1": _xavier(keys[14], (EMBED, EMBED * 2)),
        "i_b1": jax.random.uniform(keys[15], (1, EMBED * 2), jnp.float32, -0.1, 0.1),
        "i_w2": _xavier(keys[16], (EMBED * 2, EMBED)),
        "i_b2": jax.random.uniform(keys[17], (1, EMBED), jnp.float32, -0.1, 0.1),
    }

    photo_one_hop = jax.random.randint(keys[18], (n_items, L), 0, n_users)
    x = jnp.float32(0.5)   # broadcast multiplier applied after every MLP layer

    user_top, item_top = neumf_forward(params, x, photo_one_hop)
    jax.block_until_ready((user_top, item_top))

    ref_u, ref_i = neumf_reference(params, x, photo_one_hop)
    assert user_top.shape == (n_users, EMBED) and item_top.shape == (n_items, EMBED)
    # Exact softmax divide restored (review correctness note) -> tolerance is
    # tightened back; remaining slack only covers MXU f32 pass differences.
    assert jnp.allclose(user_top, ref_u, atol=1e-3, rtol=1e-3)
    assert jnp.allclose(item_top, ref_i, atol=1e-3, rtol=1e-3)
    print("KERNEL_OK")
</pallas_src>

<mosaic_0001>
module attributes {stable_mosaic.version = 11 : i64} {
  func.func @_user_mlp_kernel(%arg0: i32, %arg1: memref<1xf32, #tpu.memory_space<smem>>, %arg2: memref<16x64xf32, #tpu.memory_space<vmem>>, %arg3: memref<64x128xf32, #tpu.memory_space<vmem>>, %arg4: memref<1x128xf32, #tpu.memory_space<vmem>>, %arg5: memref<128x64xf32, #tpu.memory_space<vmem>>, %arg6: memref<1x64xf32, #tpu.memory_space<vmem>>, %arg7: memref<16x64xf32, #tpu.memory_space<vmem>>) attributes {dimension_semantics = [#tpu.dimension_semantics<parallel>], iteration_bounds = array<i64: 2>, scalar_prefetch = 0 : i64, scratch_operands = 0 : i64, tpu.core_type = #tpu.core_type<tc>, window_params = [{transform_indices = @transform_0, window_bounds = array<i64: 1>}, {transform_indices = @transform_1, window_bounds = array<i64: 16, 64>}, {pipeline_mode = #tpu.pipeline_mode<synchronous>, transform_indices = @transform_2, window_bounds = array<i64: 64, 128>}, {pipeline_mode = #tpu.pipeline_mode<synchronous>, transform_indices = @transform_3, window_bounds = array<i64: 1, 128>}, {pipeline_mode = #tpu.pipeline_mode<synchronous>, transform_indices = @transform_4, window_bounds = array<i64: 128, 64>}, {pipeline_mode = #tpu.pipeline_mode<synchronous>, transform_indices = @transform_5, window_bounds = array<i64: 1, 64>}, {transform_indices = @transform_6, window_bounds = array<i64: 16, 64>}]} {
    %c0 = arith.constant 0 : index
    %0 = memref.load %arg1[%c0] : memref<1xf32, #tpu.memory_space<smem>>
    %c0_0 = arith.constant 0 : index
    %c0_1 = arith.constant 0 : index
    %1 = vector.load %arg2[%c0_0, %c0_1] : memref<16x64xf32, #tpu.memory_space<vmem>>, vector<16x64xf32>
    %c0_2 = arith.constant 0 : index
    %c0_3 = arith.constant 0 : index
    %2 = vector.load %arg3[%c0_2, %c0_3] : memref<64x128xf32, #tpu.memory_space<vmem>>, vector<64x128xf32>
    %cst = arith.constant dense<0.000000e+00> : vector<16x128xf32>
    %3 = tpu.matmul %1, %2, %cst {dimension_numbers = #tpu.dot_dimension_numbers<[1], [0], [0], [1], [0, 0, 1, 1], [], []>} : vector<16x64xf32>, vector<64x128xf32>, vector<16x128xf32> -> vector<16x128xf32>
    %c0_4 = arith.constant 0 : index
    %c0_5 = arith.constant 0 : index
    %4 = vector.load %arg4[%c0_4, %c0_5] : memref<1x128xf32, #tpu.memory_space<vmem>>, vector<1x128xf32>
    %5 = vector.broadcast %4 : vector<1x128xf32> to vector<16x128xf32>
    %6 = arith.addf %3, %5 : vector<16x128xf32>
    %7 = vector.broadcast %0 : f32 to vector<16x128xf32>
    %8 = arith.mulf %6, %7 : vector<16x128xf32>
    %cst_6 = arith.constant 0.000000e+00 : f32
    %9 = vector.broadcast %cst_6 : f32 to vector<16x128xf32>
    %10 = arith.maximumf %8, %9 : vector<16x128xf32>
    %11 = vector.broadcast %0 : f32 to vector<16x128xf32>
    %12 = arith.mulf %10, %11 : vector<16x128xf32>
    %c0_7 = arith.constant 0 : index
    %c0_8 = arith.constant 0 : index
    %13 = vector.load %arg5[%c0_7, %c0_8] : memref<128x64xf32, #tpu.memory_space<vmem>>, vector<128x64xf32>
    %cst_9 = arith.constant dense<0.000000e+00> : vector<16x64xf32>
    %14 = tpu.matmul %12, %13, %cst_9 {dimension_numbers = #tpu.dot_dimension_numbers<[1], [0], [0], [1], [0, 0, 1, 1], [], []>} : vector<16x128xf32>, vector<128x64xf32>, vector<16x64xf32> -> vector<16x64xf32>
    %c0_10 = arith.constant 0 : index
    %c0_11 = arith.constant 0 : index
    %15 = vector.load %arg6[%c0_10, %c0_11] : memref<1x64xf32, #tpu.memory_space<vmem>>, vector<1x64xf32>
    %16 = vector.broadcast %15 : vector<1x64xf32> to vector<16x64xf32>
    %17 = arith.addf %14, %16 : vector<16x64xf32>
    %18 = vector.broadcast %0 : f32 to vector<16x64xf32>
    %19 = arith.mulf %17, %18 : vector<16x64xf32>
    %c0_12 = arith.constant 0 : index
    %c0_13 = arith.constant 0 : index
    %20 = vector.load %arg7[%c0_12, %c0_13] : memref<16x64xf32, #tpu.memory_space<vmem>>, vector<16x64xf32>
    tpu.vector_store %arg7[%c0_12, %c0_13], %19 {strides = array<i32>} : memref<16x64xf32, #tpu.memory_space<vmem>>, vector<16x64xf32>,
    return
  }
  func.func @transform_0(%arg0: i32) -> i32 {
    %c0_i32 = arith.constant 0 : i32
    %c0_i32_0 = arith.constant 0 : i32
    return %c0_i32 : i32
  }
  func.func @transform_1(%arg0: i32) -> (i32, i32) {
    %c0_i32 = arith.constant 0 : i32
    %c0_i32_0 = arith.constant 0 : i32
    return %arg0, %c0_i32 : i32, i32
  }
  func.func @transform_2(%arg0: i32) -> (i32, i32) {
    %c0_i32 = arith.constant 0 : i32
    %c0_i32_0 = arith.constant 0 : i32
    %c0_i32_1 = arith.constant 0 : i32
    return %c0_i32, %c0_i32_0 : i32, i32
  }
  func.func @transform_3(%arg0: i32) -> (i32, i32) {
    %c0_i32 = arith.constant 0 : i32
    %c0_i32_0 = arith.constant 0 : i32
    %c0_i32_1 = arith.constant 0 : i32
    return %c0_i32, %c0_i32_0 : i32, i32
  }
  func.func @transform_4(%arg0: i32) -> (i32, i32) {
    %c0_i32 = arith.constant 0 : i32
    %c0_i32_0 = arith.constant 0 : i32
    %c0_i32_1 = arith.constant 0 : i32
    return %c0_i32, %c0_i32_0 : i32, i32
  }
  func.func @transform_5(%arg0: i32) -> (i32, i32) {
    %c0_i32 = arith.constant 0 : i32
    %c0_i32_0 = arith.constant 0 : i32
    %c0_i32_1 = arith.constant 0 : i32
    return %c0_i32, %c0_i32_0 : i32, i32
  }
  func.func @transform_6(%arg0: i32) -> (i32, i32) {
    %c0_i32 = arith.constant 0 : i32
    %c0_i32_0 = arith.constant 0 : i32
    return %arg0, %c0_i32 : i32, i32
  }
}

</mosaic_0001>

<llo_original>
// kernel: tpu_custom_call.1
$region0: #{tpu_custom_call.1}
  #allocation0 [shape = 'u32[]', space=smem, size = 0x4, offset = 0x4, fixed_abs, tag = 'smem constant byte address 0x4 - core index']
  #allocation1 [shape = 'u32[144,128]{1,0:T(1,128)}', space=vmem, size = 0x12000, scoped, tag = 'internal scratch']
  #allocation2 [shape = 'f32[1]{0:T(128)S(6)}', space=smem, size = 0x200, scoped, tag = 'scoped memory for tpu_custom_call.1']
  %s0 = inlined_call_operand.<no memory space> [shape: f32[1], index: 0, kind: input, shape index: {}]
  %s1 = inlined_call_operand.vmem [shape: f32[32,64], index: 1, kind: input, shape index: {}]
  %s2 = inlined_call_operand.vmem [shape: f32[64,128], index: 2, kind: input, shape index: {}]
  %s3 = inlined_call_operand.vmem [shape: f32[1,128], index: 3, kind: input, shape index: {}]
  %s4 = inlined_call_operand.vmem [shape: f32[128,64], index: 4, kind: input, shape index: {}]
  %s5 = inlined_call_operand.vmem [shape: f32[1,64], index: 5, kind: input, shape index: {}]
  %s6 = inlined_call_operand.hbm [shape: f32[32,64], index: 6, kind: output, shape index: {}]
  %s7 = sld [smem:[#allocation0]]
  $region57: #{tpu_custom_call.1} parent=0
    _
  %s9 = ssub.s32 1, %s7
  %s10 = scalar_select 0, %s9, %s7
  %11 = sst [smem:[#allocation2]] %s0
  $region1: #{tpu_custom_call.1} parent=0
    #allocation3 [shape = 'u8[16384]{0}', space=vmem, size = 0x4000, scoped, tag = 'output window, operand 0']
    #allocation4 [shape = 's32[2]{0}', space=sflag, size = 0x8, scoped, tag = 'scoped memory for tpu_custom_call.1']
    %12 = vsyncpa [#allocation4], 0
    %s13 = scalar_lea.sflag [#allocation4], 1
    %14 = vsyncpa %s13, 0
    loop: start=0, step=1, limit=4
    $region2: #{tpu_custom_call.1} parent=1 // loop_pre_header
      _
    $region3: #{tpu_custom_call.1} parent=1 // loop_header
      %s16 = sphi 0, %s20
      %p17 = scmp.ge.s32.totalorder %s16, 4
      %s24 = sphi 0, %s24
      %s26 = sphi 0, %s24
      %s27 = sphi 0, %s26
      %s41 = sphi 0, %s27
      %s47 = sphi 0, %s49
      %s50 = sphi 0, %s47
      %s51 = sphi 0, %s50
      %s67 = sphi 0, %s51
      %s71 = sphi 0, %s71
      %s73 = sphi 0, %s71
      %s74 = sphi 0, %s73
      %s88 = sphi 0, %s74
      %s92 = sphi 0, %s92
      %s94 = sphi 0, %s92
      %s95 = sphi 0, %s94
      %s109 = sphi 0, %s95
      %s113 = sphi 0, %s113
      %s115 = sphi 0, %s113
      %s116 = sphi 0, %s115
      %s130 = sphi 0, %s116
      %s134 = sphi 0, %s134
      %s136 = sphi 0, %s134
      %s137 = sphi 0, %s136
      %s151 = sphi 0, %s137
      %s157 = sphi 0, %s159
      %s160 = sphi 0, %s157
      %s161 = sphi 0, %s160
      %s177 = sphi 0, %s161
    $region4: #{tpu_custom_call.1} parent=1 // loop_header_branch
      %19 = sbr.rel (%p17) target = $region8
    $region5: #{tpu_custom_call.1} parent=1 // loop_body
      %s21 = ssub.s32 %s16, 1
      %s22 = ssub.s32 %s16, 2
      %s23 = sadd.s32 %s16, 1
      %s25 = sadd.s32 %s24, 1
      %p28 = scmp.eq.s32.totalorder %s16, 1
      %p29 = scmp.ne.s32.totalorder %s24, %s26
      %p30 = scmp.eq.s32.totalorder %s16, 0
      %p31 = por %p29, %p30
      %p32 = scmp.ne.s32.totalorder %s24, %s26
      %p33 = scmp.eq.s32.totalorder %s21, 1
      %p34 = por %p32, %p33
      %p35 = scmp.ne.s32.totalorder %s26, %s27
      %p36 = scmp.eq.s32.totalorder %s21, 0
      %p37 = por %p35, %p36
      %p38 = scmp.ne.s32.totalorder %s26, %s27
      %p39 = scmp.eq.s32.totalorder %s22, 1
      %p40 = por %p38, %p39
      %p42 = scmp.ne.s32.totalorder %s27, %s41
      %p43 = scmp.eq.s32.totalorder %s22, 0
      %p44 = por %p42, %p43
      %s45 = ssub.s32 %s16, %s23
      %p46 = scmp.eq.s32.totalorder %s45, 0
      %s48 = sadd.s32 %s47, 1
      %s49 = scalar_select %p46, %s47, %s48
      %p52 = pneg %p46
      %p53 = scmp.eq.s32.totalorder %s16, 1
      %p54 = por %p52, %p53
      %p55 = scmp.ne.s32.totalorder %s47, %s50
      %p56 = scmp.eq.s32.totalorder %s16, 0
      %p57 = por %p55, %p56
      %p58 = scmp.ne.s32.totalorder %s47, %s50
      %p59 = scmp.eq.s32.totalorder %s21, 1
      %p60 = por %p58, %p59
      %p61 = scmp.ne.s32.totalorder %s50, %s51
      %p62 = scmp.eq.s32.totalorder %s21, 0
      %p63 = por %p61, %p62
      %p64 = scmp.ne.s32.totalorder %s50, %s51
      %p65 = scmp.eq.s32.totalorder %s22, 1
      %p66 = por %p64, %p65
      %p68 = scmp.ne.s32.totalorder %s51, %s67
      %p69 = scmp.eq.s32.totalorder %s22, 0
      %p70 = por %p68, %p69
      %s72 = sadd.s32 %s71, 1
      %p75 = scmp.eq.s32.totalorder %s16, 1
      %p76 = scmp.ne.s32.totalorder %s71, %s73
      %p77 = scmp.eq.s32.totalorder %s16, 0
      %p78 = por %p76, %p77
      %p79 = scmp.ne.s32.totalorder %s71, %s73
      %p80 = scmp.eq.s32.totalorder %s21, 1
      %p81 = por %p79, %p80
      %p82 = scmp.ne.s32.totalorder %s73, %s74
      %p83 = scmp.eq.s32.totalorder %s21, 0
      %p84 = por %p82, %p83
      %p85 = scmp.ne.s32.totalorder %s73, %s74
      %p86 = scmp.eq.s32.totalorder %s22, 1
      %p87 = por %p85, %p86
      %p89 = scmp.ne.s32.totalorder %s74, %s88
      %p90 = scmp.eq.s32.totalorder %s22, 0
      %p91 = por %p89, %p90
      %s93 = sadd.s32 %s92, 1
      %p96 = scmp.eq.s32.totalorder %s16, 1
      %p97 = scmp.ne.s32.totalorder %s92, %s94
      %p98 = scmp.eq.s32.totalorder %s16, 0
      %p99 = por %p97, %p98
      %p100 = scmp.ne.s32.totalorder %s92, %s94
      %p101 = scmp.eq.s32.totalorder %s21, 1
      %p102 = por %p100, %p101
      %p103 = scmp.ne.s32.totalorder %s94, %s95
      %p104 = scmp.eq.s32.totalorder %s21, 0
      %p105 = por %p103, %p104
      %p106 = scmp.ne.s32.totalorder %s94, %s95
      %p107 = scmp.eq.s32.totalorder %s22, 1
      %p108 = por %p106, %p107
      %p110 = scmp.ne.s32.totalorder %s95, %s109
      %p111 = scmp.eq.s32.totalorder %s22, 0
      %p112 = por %p110, %p111
      %s114 = sadd.s32 %s113, 1
      %p117 = scmp.eq.s32.totalorder %s16, 1
      %p118 = scmp.ne.s32.totalorder %s113, %s115
      %p119 = scmp.eq.s32.totalorder %s16, 0
      %p120 = por %p118, %p119
      %p121 = scmp.ne.s32.totalorder %s113, %s115
      %p122 = scmp.eq.s32.totalorder %s21, 1
      %p123 = por %p121, %p122
      %p124 = scmp.ne.s32.totalorder %s115, %s116
      %p125 = scmp.eq.s32.totalorder %s21, 0
      %p126 = por %p124, %p125
      %p127 = scmp.ne.s32.totalorder %s115, %s116
      %p128 = scmp.eq.s32.totalorder %s22, 1
      %p129 = por %p127, %p128
      %p131 = scmp.ne.s32.totalorder %s116, %s130
      %p132 = scmp.eq.s32.totalorder %s22, 0
      %p133 = por %p131, %p132
      %s135 = sadd.s32 %s134, 1
      %p138 = scmp.eq.s32.totalorder %s16, 1
      %p139 = scmp.ne.s32.totalorder %s134, %s136
      %p140 = scmp.eq.s32.totalorder %s16, 0
      %p141 = por %p139, %p140
      %p142 = scmp.ne.s32.totalorder %s134, %s136
      %p143 = scmp.eq.s32.totalorder %s21, 1
      %p144 = por %p142, %p143
      %p145 = scmp.ne.s32.totalorder %s136, %s137
      %p146 = scmp.eq.s32.totalorder %s21, 0
      %p147 = por %p145, %p146
      %p148 = scmp.ne.s32.totalorder %s136, %s137
      %p149 = scmp.eq.s32.totalorder %s22, 1
      %p150 = por %p148, %p149
      %p152 = scmp.ne.s32.totalorder %s137, %s151
      %p153 = scmp.eq.s32.totalorder %s22, 0
      %p154 = por %p152, %p153
      %s155 = ssub.s32 %s16, %s23
      %p156 = scmp.eq.s32.totalorder %s155, 0
      %s158 = sadd.s32 %s157, 1
      %s159 = scalar_select %p156, %s157, %s158
      %p162 = pneg %p156
      %p163 = scmp.eq.s32.totalorder %s16, 1
      %p164 = por %p162, %p163
      %p165 = scmp.ne.s32.totalorder %s157, %s160
      %p166 = scmp.eq.s32.totalorder %s16, 0
      %p167 = por %p165, %p166
      %p168 = scmp.ne.s32.totalorder %s157, %s160
      %p169 = scmp.eq.s32.totalorder %s21, 1
      %p170 = por %p168, %p169
      %p171 = scmp.ne.s32.totalorder %s160, %s161
      %p172 = scmp.eq.s32.totalorder %s21, 0
      %p173 = por %p171, %p172
      %p174 = scmp.ne.s32.totalorder %s160, %s161
      %p175 = scmp.eq.s32.totalorder %s22, 1
      %p176 = por %p174, %p175
      %p178 = scmp.ne.s32.totalorder %s161, %s177
      %p179 = scmp.eq.s32.totalorder %s22, 0
      %p180 = por %p178, %p179
      %p181 = scmp.le.s32.totalorder 1, %s16
      %p182 = scmp.lt.s32.totalorder %s16, 3
      %p183 = pnand %p181, %p182
      %p184 = pneg %p183
      // Predicated region
      $region9: #{tpu_custom_call.1} parent=5 // pred_check
        _
      $region10: #{tpu_custom_call.1} parent=5 // pred_check_branch
        %186 = sbr.rel (%p183) target = $region12
      $region11: #{tpu_custom_call.1} parent=5 // pred_region
        %s187 = ssub.s32 %s16, 1
        // Predicated region
        $region13: #{tpu_custom_call.1} parent=11 // pred_check
          %p188 = pneg %p37
        $region14: #{tpu_custom_call.1} parent=11 // pred_check_branch
          %190 = sbr.rel (%p188) target = $region16
        $region15: #{tpu_custom_call.1} parent=11 // pred_region
          _
        $region16: #{tpu_custom_call.1} parent=11 // pred_fallthru
          _
        // Predicated region
        $region17: #{tpu_custom_call.1} parent=11 // pred_check
          %p191 = pneg %p84
        $region18: #{tpu_custom_call.1} parent=11 // pred_check_branch
          %193 = sbr.rel (%p191) target = $region20
        $region19: #{tpu_custom_call.1} parent=11 // pred_region
          _
        $region20: #{tpu_custom_call.1} parent=11 // pred_fallthru
          _
        // Predicated region
        $region21: #{tpu_custom_call.1} parent=11 // pred_check
          %p194 = pneg %p105
        $region22: #{tpu_custom_call.1} parent=11 // pred_check_branch
          %196 = sbr.rel (%p194) target = $region24
        $region23: #{tpu_custom_call.1} parent=11 // pred_region
          _
        $region24: #{tpu_custom_call.1} parent=11 // pred_fallthru
          _
        // Predicated region
        $region25: #{tpu_custom_call.1} parent=11 // pred_check
          %p197 = pneg %p126
        $region26: #{tpu_custom_call.1} parent=11 // pred_check_branch
          %199 = sbr.rel (%p197) target = $region28
        $region27: #{tpu_custom_call.1} parent=11 // pred_region
          _
        $region28: #{tpu_custom_call.1} parent=11 // pred_fallthru
          _
        // Predicated region
        $region29: #{tpu_custom_call.1} parent=11 // pred_check
          %p200 = pneg %p147
        $region30: #{tpu_custom_call.1} parent=11 // pred_check_branch
          %202 = sbr.rel (%p200) target = $region32
        $region31: #{tpu_custom_call.1} parent=11 // pred_region
          _
        $region32: #{tpu_custom_call.1} parent=11 // pred_fallthru
          _
      $region12: #{tpu_custom_call.1} parent=5 // pred_fallthru
        _
      %p203 = scmp.lt.s32.totalorder %s16, 2
      // Predicated region
      $region33: #{tpu_custom_call.1} parent=5 // pred_check
        %p204 = pneg %p203
      $region34: #{tpu_custom_call.1} parent=5 // pred_check_branch
        %206 = sbr.rel (%p204) target = $region36
      $region35: #{tpu_custom_call.1} parent=5 // pred_region
        // Predicated region
        $region37: #{tpu_custom_call.1} parent=35 // pred_check
          %p207 = pneg %p57
        $region38: #{tpu_custom_call.1} parent=35 // pred_check_branch
          %209 = sbr.rel (%p207) target = $region40
        $region39: #{tpu_custom_call.1} parent=35 // pred_region
          %s210 = smul.u32 2, %s16
          %p211 = scmp.lt.s32.totalorder %s210, 3
          %s212 = scalar_select %p211, %s210, 3
          %s213 = smul.addr %s212, 8
          %s214 = scalar_lea.vmem %s1, %s213
          %s215 = smul.u32 2, %s16
        $region40: #{tpu_custom_call.1} parent=35 // pred_fallthru
          _
      $region36: #{tpu_custom_call.1} parent=5 // pred_fallthru
        _
      %p216 = scmp.le.s32.totalorder 1, %s16
      %p217 = scmp.lt.s32.totalorder %s16, 3
      %p218 = pnand %p216, %p217
      %p219 = pneg %p218
      // Predicated region
      $region41: #{tpu_custom_call.1} parent=5 // pred_check
        _
      $region42: #{tpu_custom_call.1} parent=5 // pred_check_branch
        %221 = sbr.rel (%p218) target = $region44
      $region43: #{tpu_custom_call.1} parent=5 // pred_region
        %s222 = ssub.s32 %s16, 1
        %p223 = pneg %p37
        %p224 = pneg %p34
        %s225 = smul.u32 2, %s21
        %p226 = scmp.lt.s32.totalorder %s225, 3
        %s227 = scalar_select %p226, %s225, 3
        %s228 = smul.addr %s227, 8
        %s229 = scalar_lea.vmem %s1, %s228
        %p230 = pneg %p63
        %p231 = pneg %p60
        %p232 = pneg %p84
        %p233 = pneg %p81
        %p234 = pneg %p105
        %p235 = pneg %p102
        %p236 = pneg %p126
        %p237 = pneg %p123
        %p238 = pneg %p147
        %p239 = pneg %p144
        %p240 = pneg %p173
        %p241 = pneg %p170
        %s242 = sand.u32 %s160, 1
        %s243 = scalar_lea.sflag [#allocation4], %s242
        %s244 = sand.u32 %s160, 1
        %s245 = smul.addr %s244, 16
        %s246 = scalar_lea.vmem [#allocation3], %s245
        %s247 = smul.u32 2, %s21
        %p248 = scmp.lt.s32.totalorder %s247, 3
        %s249 = scalar_select %p248, %s247, 3
        %s250 = smul.addr %s249, 8
        %s251 = scalar_lea.vmem %s1, %s250
        %s252 = smul.u32 2, %s21
        %s253 = smul.u32 2, %s21
        %s254 = sld [smem:[#allocation2]]
        %v255 = vld [vmem:[%s251] sm:$0xff]
        %v256 = vld [vmem:[%s251 + $0x8] sm:$0xff]
        %v257 = vld [vmem:[%s2] sm:$0xff]
        %v258 = vld [vmem:[%s2 + $0x8] sm:$0xff]
        %v259 = vld [vmem:[%s2 + $0x10] sm:$0xff]
        %v260 = vld [vmem:[%s2 + $0x18] sm:$0xff]
        %v261 = vld [vmem:[%s2 + $0x20] sm:$0xff]
        %v262 = vld [vmem:[%s2 + $0x28] sm:$0xff]
        %v263 = vld [vmem:[%s2 + $0x30] sm:$0xff]
        %v264 = vld [vmem:[%s2 + $0x38] sm:$0xff]
        %v265 = vld [vmem:[%s3] sm:$0x1]
        %v267 = vlaneseq
        %v268 = vshrl.u32 %v267, 7
        %v269 = vsub.s32 0, %v268
        %v270 = vrot.slane %v265, %v269
        %vm272 = vcmask 523264
        %v274 = vsel %vm272, %v255, 0
        %v277 = vsel %vm272, %v256, 0
        %279 = vmatprep.subr.mxu0 0.0
        %280 = vmatpush1.msra.mxu0 %v257
        %281 = vmatprep.subr.mxu0 0.0
        %282 = vmatpush1.msra.mxu0 %v258
        %283 = vmatprep.subr.mxu0 0.0
        %284 = vmatpush1.msra.mxu0 %v259
        %285 = vmatprep.subr.mxu0 0.0
        %286 = vmatpush1.msra.mxu0 %v260
        %287 = vmatprep.subr.mxu0 0.0
        %288 = vmatpush1.msra.mxu0 %v261
        %289 = vmatprep.subr.mxu0 0.0
        %290 = vmatpush1.msra.mxu0 %v262
        %291 = vmatprep.subr.mxu0 0.0
        %292 = vmatpush1.msra.mxu0 %v263
        %293 = vmatprep.subr.mxu0 0.0
        %294 = vmatpush1.msra.mxu0 %v264
        %295 = vmatprep.subr.mxu0 0.0
        %296 = vmatpush1.msra.mxu0 0.0
        %297 = vmatprep.subr.mxu0 0.0
        %298 = vmatpush1.msra.mxu0 0.0
        %299 = vmatprep.subr.mxu0 0.0
        %300 = vmatpush1.msra.mxu0 0.0
        %301 = vmatprep.subr.mxu0 0.0
        %302 = vmatpush1.msra.mxu0 0.0
        %303 = vmatprep.subr.mxu0 0.0
        %304 = vmatpush1.msra.mxu0 0.0
        %305 = vmatprep.subr.mxu0 0.0
        %306 = vmatpush1.msra.mxu0 0.0
        %307 = vmatprep.subr.mxu0 0.0
        %308 = vmatpush1.msra.mxu0 0.0
        %309 = vmatprep.subr.mxu0 0.0
        %310 = vmatpush1.msra.mxu0 0.0
        %311 = vmatprep.subr.mxu0 0.0
        %312 = vmatpush1.msra.mxu0 0.0
        %313 = vmatprep.subr.mxu0 0.0
        %314 = vmatpush1.msra.mxu0 0.0
        %315 = vmatprep.subr.mxu0 0.0
        %316 = vmatpush1.msra.mxu0 0.0
        %317 = vmatprep.subr.mxu0 0.0
        %318 = vmatpush1.msra.mxu0 0.0
        %319 = vmatprep.subr.mxu0 0.0
        %320 = vmatpush1.msra.mxu0 0.0
        %321 = vmatprep.subr.mxu0 0.0
        %322 = vmatpush1.msra.mxu0 0.0
        %323 = vmatprep.subr.mxu0 0.0
        %324 = vmatpush1.msra.mxu0 0.0
        %325 = vmatprep.subr.mxu0 0.0
        %326 = vmatpush1.msra.mxu0 0.0
        %327 = vmatprep.subr.mxu0 0.0
        %328 = vmatpush1.msra.mxu0 0.0
        %329 = vmatprep.subr.mxu0 0.0
        %330 = vmatpush1.msra.mxu0 0.0
        %331 = vmatprep.subr.mxu0 0.0
        %332 = vmatpush1.msra.mxu0 0.0
        %333 = vmatprep.subr.mxu0 0.0
        %334 = vmatpush1.msra.mxu0 0.0
        %335 = vmatprep.subr.mxu0 0.0
        %336 = vmatpush1.msra.mxu0 0.0
        %337 = vmatprep.subr.mxu0 0.0
        %338 = vmatpush1.msra.mxu0 0.0
        %339 = vmatprep.subr.mxu0 0.0
        %340 = vmatpush1.msra.mxu0 0.0
        %341 = vmatprep.subr.mxu0 0.0
        %342 = vmatpush1.msra.mxu0 0.0
        %343 = vmatprep.mubr.f32.mxu0 0.0
        %344 = vmatmul.mubr.f32.gmra.mrb[0].mxu0 %v274
        %v345 = vpop.f32.mrb[0].mxu0
        %v346 = vadd.f32 %v270, %v345
        %v347 = vpop.f32.mrb[0].mxu0
        %348 = vmatprep.mubr.f32.mxu0 0.0
        %349 = vmatmul.mubr.f32.gmra.mrb[0].mxu0 %v277
        %v350 = vpop.f32.mrb[0].mxu0
        %v351 = vadd.f32 %v270, %v350
        %v352 = vpop.f32.mrb[0].mxu0
        %353 = vdwg.mxu0
        %v354 = vstv %s254
        %v355 = vmul.f32 %v346, %v354
        %v356 = vmul.f32 %v351, %v354
        %v357 = vmax.f32 %v355, 0.0
        %v358 = vmax.f32 %v356, 0.0
        %v359 = vmul.f32 %v357, %v354
        %v360 = vmul.f32 %v358, %v354
        %v361 = vld [vmem:[%s4] sm:$0xff]
        %v362 = vld [vmem:[%s4 + $0x8] sm:$0xff]
        %v363 = vld [vmem:[%s4 + $0x10] sm:$0xff]
        %v364 = vld [vmem:[%s4 + $0x18] sm:$0xff]
        %v365 = vld [vmem:[%s4 + $0x20] sm:$0xff]
        %v366 = vld [vmem:[%s4 + $0x28] sm:$0xff]
        %v367 = vld [vmem:[%s4 + $0x30] sm:$0xff]
        %v368 = vld [vmem:[%s4 + $0x38] sm:$0xff]
        %v369 = vld [vmem:[%s4 + $0x40] sm:$0xff]
        %v370 = vld [vmem:[%s4 + $0x48] sm:$0xff]
        %v371 = vld [vmem:[%s4 + $0x50] sm:$0xff]
        %v372 = vld [vmem:[%s4 + $0x58] sm:$0xff]
        %v373 = vld [vmem:[%s4 + $0x60] sm:$0xff]
        %v374 = vld [vmem:[%s4 + $0x68] sm:$0xff]
        %v375 = vld [vmem:[%s4 + $0x70] sm:$0xff]
        %v376 = vld [vmem:[%s4 + $0x78] sm:$0xff]
        %v377 = vld [vmem:[%s5] sm:$0x1]
        %v379 = vlaneseq
        %v380 = vshrl.u32 %v379, 7
        %v381 = vsub.s32 0, %v380
        %v382 = vrot.slane %v377, %v381
        %384 = vmatprep.subr.mxu0 0.0
        %385 = vmatpush1.msra.mxu0 %v361
        %386 = vmatprep.subr.mxu0 0.0
        %387 = vmatpush1.msra.mxu0 %v362
        %388 = vmatprep.subr.mxu0 0.0
        %389 = vmatpush1.msra.mxu0 %v363
        %390 = vmatprep.subr.mxu0 0.0
        %391 = vmatpush1.msra.mxu0 %v364
        %392 = vmatprep.subr.mxu0 0.0
        %393 = vmatpush1.msra.mxu0 %v365
        %394 = vmatprep.subr.mxu0 0.0
        %395 = vmatpush1.msra.mxu0 %v366
        %396 = vmatprep.subr.mxu0 0.0
        %397 = vmatpush1.msra.mxu0 %v367
        %398 = vmatprep.subr.mxu0 0.0
        %399 = vmatpush1.msra.mxu0 %v368
        %400 = vmatprep.subr.mxu0 0.0
        %401 = vmatpush1.msra.mxu0 %v369
        %402 = vmatprep.subr.mxu0 0.0
        %403 = vmatpush1.msra.mxu0 %v370
        %404 = vmatprep.subr.mxu0 0.0
        %405 = vmatpush1.msra.mxu0 %v371
        %406 = vmatprep.subr.mxu0 0.0
        %407 = vmatpush1.msra.mxu0 %v372
        %408 = vmatprep.subr.mxu0 0.0
        %409 = vmatpush1.msra.mxu0 %v373
        %410 = vmatprep.subr.mxu0 0.0
        %411 = vmatpush1.msra.mxu0 %v374
        %412 = vmatprep.subr.mxu0 0.0
        %413 = vmatpush1.msra.mxu0 %v375
        %414 = vmatprep.subr.mxu0 0.0
        %415 = vmatpush1.msra.mxu0 %v376
        %416 = vmatprep.subr.mxu0 0.0
        %417 = vmatpush1.msra.mxu0 0.0
        %418 = vmatprep.subr.mxu0 0.0
        %419 = vmatpush1.msra.mxu0 0.0
        %420 = vmatprep.subr.mxu0 0.0
        %421 = vmatpush1.msra.mxu0 0.0
        %422 = vmatprep.subr.mxu0 0.0
        %423 = vmatpush1.msra.mxu0 0.0
        %424 = vmatprep.subr.mxu0 0.0
        %425 = vmatpush1.msra.mxu0 0.0
        %426 = vmatprep.subr.mxu0 0.0
        %427 = vmatpush1.msra.mxu0 0.0
        %428 = vmatprep.subr.mxu0 0.0
        %429 = vmatpush1.msra.mxu0 0.0
        %430 = vmatprep.subr.mxu0 0.0
        %431 = vmatpush1.msra.mxu0 0.0
        %432 = vmatprep.subr.mxu0 0.0
        %433 = vmatpush1.msra.mxu0 0.0
        %434 = vmatprep.subr.mxu0 0.0
        %435 = vmatpush1.msra.mxu0 0.0
        %436 = vmatprep.subr.mxu0 0.0
        %437 = vmatpush1.msra.mxu0 0.0
        %438 = vmatprep.subr.mxu0 0.0
        %439 = vmatpush1.msra.mxu0 0.0
        %440 = vmatprep.subr.mxu0 0.0
        %441 = vmatpush1.msra.mxu0 0.0
        %442 = vmatprep.subr.mxu0 0.0
        %443 = vmatpush1.msra.mxu0 0.0
        %444 = vmatprep.subr.mxu0 0.0
        %445 = vmatpush1.msra.mxu0 0.0
        %446 = vmatprep.subr.mxu0 0.0
        %447 = vmatpush1.msra.mxu0 0.0
        %448 = vmatprep.mubr.f32.mxu0 0.0
        %449 = vmatmul.mubr.f32.gmra.mrb[0].mxu0 %v359
        %v450 = vpop.f32.mrb[0].mxu0
        %v451 = vadd.f32 %v382, %v450
        %v452 = vpop.f32.mrb[0].mxu0
        %453 = vmatprep.mubr.f32.mxu0 0.0
        %454 = vmatmul.mubr.f32.gmra.mrb[0].mxu0 %v360
        %v455 = vpop.f32.mrb[0].mxu0
        %v456 = vadd.f32 %v382, %v455
        %v457 = vpop.f32.mrb[0].mxu0
        %458 = vdwg.mxu0
        %v459 = vmul.f32 %v451, %v354
        %v460 = vmul.f32 %v456, %v354
        %461 = vst.msk [vmem:[%s246] sm:$0xff] %vm272, %v459
        %462 = vst.msk [vmem:[%s246 + $0x8] sm:$0xff] %vm272, %v460
        %s463 = sand.u32 %s160, 1
        %s464 = scalar_lea.sflag [#allocation4], %s463
        %s465 = sand.u32 %s160, 1
        %s466 = smul.addr %s465, 16
        %s467 = scalar_lea.vmem [#allocation3], %s466
        // Predicated region
        $region45: #{tpu_custom_call.1} parent=43 // pred_check
          %p468 = pneg %p170
        $region46: #{tpu_custom_call.1} parent=43 // pred_check_branch
          %470 = sbr.rel (%p468) target = $region48
        $region47: #{tpu_custom_call.1} parent=43 // pred_region
          %s471 = smul.u32 2, %s21
          %s473 = ssub.s32 256, 256
          %474 = vsyncadd %s464, %s473
          %s475 = smul.addr %s471, 128
          %s476 = scalar_lea.hbm %s6, %s475
          %s477 = sshll.u32 %s467, 4
          %s478 = int_to_ptr.vmem [resolvable:$true] %s477
          %483 = dma.vmem_to_hbm [thread:$0]  %s478, 256, %s476, %s464, 128, 128, 8
        $region48: #{tpu_custom_call.1} parent=43 // pred_fallthru
          _
      $region44: #{tpu_custom_call.1} parent=5 // pred_fallthru
        _
      %p484 = scmp.le.s32.totalorder 2, %s16
      // Predicated region
      $region49: #{tpu_custom_call.1} parent=5 // pred_check
        %p485 = pneg %p484
      $region50: #{tpu_custom_call.1} parent=5 // pred_check_branch
        %487 = sbr.rel (%p485) target = $region52
      $region51: #{tpu_custom_call.1} parent=5 // pred_region
        %s488 = ssub.s32 %s16, 2
        // Predicated region
        $region53: #{tpu_custom_call.1} parent=51 // pred_check
          %p489 = pneg %p176
        $region54: #{tpu_custom_call.1} parent=51 // pred_check_branch
          %491 = sbr.rel (%p489) target = $region56
        $region55: #{tpu_custom_call.1} parent=51 // pred_region
          %s492 = sand.u32 %s161, 1
          %s493 = scalar_lea.sflag [#allocation4], %s492
          %s494 = sand.u32 %s161, 1
          %s495 = smul.addr %s494, 16
          %s496 = scalar_lea.vmem [#allocation3], %s495
          %497 = dma.done %s493, 256
        $region56: #{tpu_custom_call.1} parent=51 // pred_fallthru
          _
      $region52: #{tpu_custom_call.1} parent=5 // pred_fallthru
        _
    $region6: #{tpu_custom_call.1} parent=1 // loop_footer
      %s20 = sadd.s32 1, %s16
    $region7: #{tpu_custom_call.1} parent=1 // loop_footer_branch
      %15 = sbr.rel target = $region3
    $region8: #{tpu_custom_call.1} parent=1 // loop_exit
      _
    %498 = vsyncpa [#allocation4], 1
    %s499 = scalar_lea.sflag [#allocation4], 1
    %500 = vsyncpa %s499, 1

</llo_original>
